<compile_context>
chip_gen: v7x
topology: tpu7x:2x2x1
jax: 0.10.0
libtpu: 0.0.40
codegen_flags: <defaults>
</compile_context>

<pallas_src>
import numpy as np
import jax
import jax.numpy as jnp
from jax import lax
from jax.experimental import pallas as pl
from jax.experimental.pallas import tpu as pltpu

# ----------------------------- problem sizes -------------------------------
B, C, H, Wd = 2, 3, 32, 16          # image NCHW (small, consistent with forward)
SCALE, KH, KW = 7, 32, 16           # Upsample(x7), AvgPool2d((32,16))
PH, PW = (H * SCALE) // KH, (Wd * SCALE) // KW   # pooled spatial = 7 x 7
D = 32                              # CLIP embed dim (synthetic)
N_TXT, SEQ, VOCAB, E = 2, 8, 49, 16 # text: tokens -> embed -> mean -> project
LOGIT_SCALE = 1.0 / 0.07            # CLIP logit_scale.exp() at init
EPS = 1e-12


# ------------------- pooling matrices (upsample x7 + avgpool) --------------
def pool_matrices(h, w, scale=SCALE, kh=KH, kw=KW):
    """A[oh, y] * x[y, x] * Bm[x, ow] == avgpool(nearest_upsample(x))[oh, ow]."""
    ph, pw = (h * scale) // kh, (w * scale) // kw
    A = np.zeros((ph, h), np.float32)
    for oh in range(ph):
        for yy in range(oh * kh, oh * kh + kh):
            A[oh, yy // scale] += 1.0 / kh
    Bm = np.zeros((w, pw), np.float32)
    for ow in range(pw):
        for xx in range(ow * kw, ow * kw + kw):
            Bm[xx // scale, ow] += 1.0 / kw
    return A, Bm


def fold_pool_into_projection(A, Bm, Wi):
    """W_eff s.t. image.reshape(B,-1) @ W_eff == flatten(pool(image)) @ Wi."""
    ph, h = A.shape
    w, pw = Bm.shape
    d = Wi.shape[1]
    c = Wi.shape[0] // (ph * pw)
    Wi4 = np.asarray(Wi, np.float32).reshape(c, ph, pw, d)
    w_eff = np.einsum("py,xq,cpqd->cyxd", A, Bm, Wi4).reshape(c * h * w, d)
    return jnp.asarray(w_eff, jnp.float32)


# --------------------------- fused Pallas kernel -----------------------------
def fused_clip_similarity(tokens, img_flat, emb_table, w_eff, bi, wt, bt):
    b, f = img_flat.shape
    n_txt, seq = tokens.shape
    vocab, e = emb_table.shape
    d = w_eff.shape[1]

    def kernel(tok_ref, img_ref, emb_ref, weff_ref, bi_ref, wt_ref, bt_ref,
               out_ref):
        # ---- text front-end: embedding gather + mean as a one-hot matmul ---
        tok = tok_ref[...]                                        # (N, S) int32
        vocab_iota = lax.broadcasted_iota(jnp.int32, (n_txt, vocab), 1)
        counts = jnp.zeros((n_txt, vocab), jnp.float32)
        for s in range(seq):                                      # tiny unroll
            counts = counts + (tok[:, s:s + 1] == vocab_iota).astype(jnp.float32)
        txt_emb = (1.0 / seq) * jnp.dot(
            counts, emb_ref[...], preferred_element_type=jnp.float32)   # (N, E)

        # ---- linear projections (pooling already folded into W_eff) --------
        img_feat = jnp.dot(img_ref[...], weff_ref[...],
                           preferred_element_type=jnp.float32) + bi_ref[...]
        txt_feat = jnp.dot(txt_emb, wt_ref[...],
                           preferred_element_type=jnp.float32) + bt_ref[...]

        # ---- L2 normalize (eps-guarded) -------------------------------------
        img_feat = img_feat * lax.rsqrt(
            jnp.sum(img_feat * img_feat, axis=-1, keepdims=True) + EPS)
        txt_feat = txt_feat * lax.rsqrt(
            jnp.sum(txt_feat * txt_feat, axis=-1, keepdims=True) + EPS)

        # ---- scaled cosine logits: contract last dims, no transpose --------
        logits = LOGIT_SCALE * lax.dot_general(
            img_feat, txt_feat, (((1,), (1,)), ((), ())),
            preferred_element_type=jnp.float32)                   # (B, N)

        out_ref[...] = 1.0 - logits / 100.0                       # single store

    return pl.pallas_call(
        kernel,
        out_shape=jax.ShapeDtypeStruct((b, n_txt), jnp.float32),
        grid=(1,),                                  # one step, one TensorCore
        in_specs=[
            pl.BlockSpec((n_txt, seq), lambda i: (0, 0)),   # tokens (int32)
            pl.BlockSpec((b, f), lambda i: (0, 0)),         # flat image
            pl.BlockSpec((vocab, e), lambda i: (0, 0)),     # embedding table
            pl.BlockSpec((f, d), lambda i: (0, 0)),         # folded image proj
            pl.BlockSpec((1, d), lambda i: (0, 0)),         # image bias
            pl.BlockSpec((e, d), lambda i: (0, 0)),         # text proj
            pl.BlockSpec((1, d), lambda i: (0, 0)),         # text bias
        ],
        out_specs=pl.BlockSpec((b, n_txt), lambda i: (0, 0)),
        compiler_params=pltpu.CompilerParams(
            dimension_semantics=("arbitrary",)),     # do NOT megacore-shard
    )(tokens, img_flat, emb_table, w_eff, bi, wt, bt)


# ------------------------------- forward ------------------------------------
def clip_loss_forward(image, tokens, params):
    emb_table, w_eff, bi, wt, bt = params
    img_flat = image.reshape(image.shape[0], -1)   # contiguous reshape (glue)
    return fused_clip_similarity(tokens, img_flat, emb_table, w_eff, bi, wt, bt)


# -------------------------- pure-JAX reference -------------------------------
def reference_forward(image, tokens, emb_table, Wi, bi, Wt, bt, A, Bm):
    pooled = jnp.einsum("py,bcyx,xq->bcpq", A, image, Bm)   # upsample+avgpool
    img_feat = pooled.reshape(image.shape[0], -1) @ Wi + bi
    txt_emb = jnp.take(emb_table, tokens, axis=0).mean(axis=1)
    txt_feat = txt_emb @ Wt + bt
    img_feat = img_feat / jnp.linalg.norm(img_feat, axis=-1, keepdims=True)
    txt_feat = txt_feat / jnp.linalg.norm(txt_feat, axis=-1, keepdims=True)
    logits = LOGIT_SCALE * img_feat @ txt_feat.T
    return 1.0 - logits / 100.0


if __name__ == "__main__":
    key = jax.random.PRNGKey(0)
    k1, k2, k3, k4, k5, k6, k7 = jax.random.split(key, 7)

    image = jax.random.normal(k1, (B, C, H, Wd), jnp.float32)
    tokens = jax.random.randint(k2, (N_TXT, SEQ), 0, VOCAB, dtype=jnp.int32)

    # deterministic synthetic "CLIP" parameters
    emb_table = 0.02 * jax.random.normal(k3, (VOCAB, E), jnp.float32)
    Wi = 0.05 * jax.random.normal(k4, (C * PH * PW, D), jnp.float32)
    bi = 0.01 * jax.random.normal(k5, (1, D), jnp.float32)
    Wt = 0.05 * jax.random.normal(k6, (E, D), jnp.float32)
    bt = 0.01 * jax.random.normal(k7, (1, D), jnp.float32)

    # offline fold: pooling + flatten + image projection -> W_eff
    A_np, Bm_np = pool_matrices(H, Wd)
    w_eff = fold_pool_into_projection(A_np, Bm_np, Wi)
    params = (emb_table, w_eff, bi, Wt, bt)

    sim = clip_loss_forward(image, tokens, params)
    jax.block_until_ready(sim)
    assert sim.shape == (B, N_TXT) and sim.dtype == jnp.float32

    ref = reference_forward(image, tokens, emb_table, Wi, bi, Wt, bt,
                            jnp.asarray(A_np), jnp.asarray(Bm_np))
    assert np.allclose(np.asarray(sim), np.asarray(ref), atol=1e-3, rtol=1e-3), (
        float(np.abs(np.asarray(sim) - np.asarray(ref)).max()))
    print("KERNEL_OK")
</pallas_src>

<mosaic_0001>
module attributes {stable_mosaic.version = 11 : i64} {
  func.func @kernel(%arg0: i32, %arg1: memref<2x8xi32, #tpu.memory_space<vmem>>, %arg2: memref<2x1536xf32, #tpu.memory_space<vmem>>, %arg3: memref<49x16xf32, #tpu.memory_space<vmem>>, %arg4: memref<1536x32xf32, #tpu.memory_space<vmem>>, %arg5: memref<1x32xf32, #tpu.memory_space<vmem>>, %arg6: memref<16x32xf32, #tpu.memory_space<vmem>>, %arg7: memref<1x32xf32, #tpu.memory_space<vmem>>, %arg8: memref<2x2xf32, #tpu.memory_space<vmem>>) attributes {dimension_semantics = [#tpu.dimension_semantics<arbitrary>], iteration_bounds = array<i64: 1>, scalar_prefetch = 0 : i64, scratch_operands = 0 : i64, tpu.core_type = #tpu.core_type<tc>, window_params = [{pipeline_mode = #tpu.pipeline_mode<synchronous>, transform_indices = @transform_0, window_bounds = array<i64: 2, 8>}, {pipeline_mode = #tpu.pipeline_mode<synchronous>, transform_indices = @transform_1, window_bounds = array<i64: 2, 1536>}, {pipeline_mode = #tpu.pipeline_mode<synchronous>, transform_indices = @transform_2, window_bounds = array<i64: 49, 16>}, {pipeline_mode = #tpu.pipeline_mode<synchronous>, transform_indices = @transform_3, window_bounds = array<i64: 1536, 32>}, {pipeline_mode = #tpu.pipeline_mode<synchronous>, transform_indices = @transform_4, window_bounds = array<i64: 1, 32>}, {pipeline_mode = #tpu.pipeline_mode<synchronous>, transform_indices = @transform_5, window_bounds = array<i64: 16, 32>}, {pipeline_mode = #tpu.pipeline_mode<synchronous>, transform_indices = @transform_6, window_bounds = array<i64: 1, 32>}, {pipeline_mode = #tpu.pipeline_mode<synchronous>, transform_indices = @transform_7, window_bounds = array<i64: 2, 2>}]} {
    %c0 = arith.constant 0 : index
    %c0_0 = arith.constant 0 : index
    %0 = vector.load %arg1[%c0, %c0_0] : memref<2x8xi32, #tpu.memory_space<vmem>>, vector<2x8xi32>
    %1 = tpu.iota {dimensions = array<i32: 1>} : vector<2x49xi32>
    %cst = arith.constant 0.000000e+00 : f32
    %2 = vector.broadcast %cst : f32 to vector<2x49xf32>
    %3 = vector.extract_strided_slice %0 {offsets = [0, 0], sizes = [2, 1], strides = [1, 1]} : vector<2x8xi32> to vector<2x1xi32>
    %4 = vector.broadcast %3 : vector<2x1xi32> to vector<2x49xi32>
    %5 = arith.cmpi eq, %4, %1 : vector<2x49xi32>
    %6 = arith.extui %5 : vector<2x49xi1> to vector<2x49xi32>
    %7 = arith.sitofp %6 : vector<2x49xi32> to vector<2x49xf32>
    %8 = arith.addf %2, %7 : vector<2x49xf32>
    %9 = vector.extract_strided_slice %0 {offsets = [0, 1], sizes = [2, 1], strides = [1, 1]} : vector<2x8xi32> to vector<2x1xi32>
    %10 = vector.broadcast %9 : vector<2x1xi32> to vector<2x49xi32>
    %11 = arith.cmpi eq, %10, %1 : vector<2x49xi32>
    %12 = arith.extui %11 : vector<2x49xi1> to vector<2x49xi32>
    %13 = arith.sitofp %12 : vector<2x49xi32> to vector<2x49xf32>
    %14 = arith.addf %8, %13 : vector<2x49xf32>
    %15 = vector.extract_strided_slice %0 {offsets = [0, 2], sizes = [2, 1], strides = [1, 1]} : vector<2x8xi32> to vector<2x1xi32>
    %16 = vector.broadcast %15 : vector<2x1xi32> to vector<2x49xi32>
    %17 = arith.cmpi eq, %16, %1 : vector<2x49xi32>
    %18 = arith.extui %17 : vector<2x49xi1> to vector<2x49xi32>
    %19 = arith.sitofp %18 : vector<2x49xi32> to vector<2x49xf32>
    %20 = arith.addf %14, %19 : vector<2x49xf32>
    %21 = vector.extract_strided_slice %0 {offsets = [0, 3], sizes = [2, 1], strides = [1, 1]} : vector<2x8xi32> to vector<2x1xi32>
    %22 = vector.broadcast %21 : vector<2x1xi32> to vector<2x49xi32>
    %23 = arith.cmpi eq, %22, %1 : vector<2x49xi32>
    %24 = arith.extui %23 : vector<2x49xi1> to vector<2x49xi32>
    %25 = arith.sitofp %24 : vector<2x49xi32> to vector<2x49xf32>
    %26 = arith.addf %20, %25 : vector<2x49xf32>
    %27 = vector.extract_strided_slice %0 {offsets = [0, 4], sizes = [2, 1], strides = [1, 1]} : vector<2x8xi32> to vector<2x1xi32>
    %28 = vector.broadcast %27 : vector<2x1xi32> to vector<2x49xi32>
    %29 = arith.cmpi eq, %28, %1 : vector<2x49xi32>
    %30 = arith.extui %29 : vector<2x49xi1> to vector<2x49xi32>
    %31 = arith.sitofp %30 : vector<2x49xi32> to vector<2x49xf32>
    %32 = arith.addf %26, %31 : vector<2x49xf32>
    %33 = vector.extract_strided_slice %0 {offsets = [0, 5], sizes = [2, 1], strides = [1, 1]} : vector<2x8xi32> to vector<2x1xi32>
    %34 = vector.broadcast %33 : vector<2x1xi32> to vector<2x49xi32>
    %35 = arith.cmpi eq, %34, %1 : vector<2x49xi32>
    %36 = arith.extui %35 : vector<2x49xi1> to vector<2x49xi32>
    %37 = arith.sitofp %36 : vector<2x49xi32> to vector<2x49xf32>
    %38 = arith.addf %32, %37 : vector<2x49xf32>
    %39 = vector.extract_strided_slice %0 {offsets = [0, 6], sizes = [2, 1], strides = [1, 1]} : vector<2x8xi32> to vector<2x1xi32>
    %40 = vector.broadcast %39 : vector<2x1xi32> to vector<2x49xi32>
    %41 = arith.cmpi eq, %40, %1 : vector<2x49xi32>
    %42 = arith.extui %41 : vector<2x49xi1> to vector<2x49xi32>
    %43 = arith.sitofp %42 : vector<2x49xi32> to vector<2x49xf32>
    %44 = arith.addf %38, %43 : vector<2x49xf32>
    %45 = vector.extract_strided_slice %0 {offsets = [0, 7], sizes = [2, 1], strides = [1, 1]} : vector<2x8xi32> to vector<2x1xi32>
    %46 = vector.broadcast %45 : vector<2x1xi32> to vector<2x49xi32>
    %47 = arith.cmpi eq, %46, %1 : vector<2x49xi32>
    %48 = arith.extui %47 : vector<2x49xi1> to vector<2x49xi32>
    %49 = arith.sitofp %48 : vector<2x49xi32> to vector<2x49xf32>
    %50 = arith.addf %44, %49 : vector<2x49xf32>
    %c0_1 = arith.constant 0 : index
    %c0_2 = arith.constant 0 : index
    %51 = vector.load %arg3[%c0_1, %c0_2] : memref<49x16xf32, #tpu.memory_space<vmem>>, vector<49x16xf32>
    %cst_3 = arith.constant dense<0.000000e+00> : vector<2x16xf32>
    %52 = tpu.matmul %50, %51, %cst_3 {dimension_numbers = #tpu.dot_dimension_numbers<[1], [0], [0], [1], [0, 0, 1, 1], [], []>} : vector<2x49xf32>, vector<49x16xf32>, vector<2x16xf32> -> vector<2x16xf32>
    %cst_4 = arith.constant 1.250000e-01 : f32
    %53 = vector.broadcast %cst_4 : f32 to vector<2x16xf32>
    %54 = arith.mulf %53, %52 : vector<2x16xf32>
    %c0_5 = arith.constant 0 : index
    %c0_6 = arith.constant 0 : index
    %55 = vector.load %arg2[%c0_5, %c0_6] : memref<2x1536xf32, #tpu.memory_space<vmem>>, vector<2x1536xf32>
    %c0_7 = arith.constant 0 : index
    %c0_8 = arith.constant 0 : index
    %56 = vector.load %arg4[%c0_7, %c0_8] : memref<1536x32xf32, #tpu.memory_space<vmem>>, vector<1536x32xf32>
    %cst_9 = arith.constant dense<0.000000e+00> : vector<2x32xf32>
    %57 = tpu.matmul %55, %56, %cst_9 {dimension_numbers = #tpu.dot_dimension_numbers<[1], [0], [0], [1], [0, 0, 1, 1], [], []>} : vector<2x1536xf32>, vector<1536x32xf32>, vector<2x32xf32> -> vector<2x32xf32>
    %c0_10 = arith.constant 0 : index
    %c0_11 = arith.constant 0 : index
    %58 = vector.load %arg5[%c0_10, %c0_11] : memref<1x32xf32, #tpu.memory_space<vmem>>, vector<1x32xf32>
    %59 = vector.broadcast %58 : vector<1x32xf32> to vector<2x32xf32>
    %60 = arith.addf %57, %59 : vector<2x32xf32>
    %c0_12 = arith.constant 0 : index
    %c0_13 = arith.constant 0 : index
    %61 = vector.load %arg6[%c0_12, %c0_13] : memref<16x32xf32, #tpu.memory_space<vmem>>, vector<16x32xf32>
    %cst_14 = arith.constant dense<0.000000e+00> : vector<2x32xf32>
    %62 = tpu.matmul %54, %61, %cst_14 {dimension_numbers = #tpu.dot_dimension_numbers<[1], [0], [0], [1], [0, 0, 1, 1], [], []>} : vector<2x16xf32>, vector<16x32xf32>, vector<2x32xf32> -> vector<2x32xf32>
    %c0_15 = arith.constant 0 : index
    %c0_16 = arith.constant 0 : index
    %63 = vector.load %arg7[%c0_15, %c0_16] : memref<1x32xf32, #tpu.memory_space<vmem>>, vector<1x32xf32>
    %64 = vector.broadcast %63 : vector<1x32xf32> to vector<2x32xf32>
    %65 = arith.addf %62, %64 : vector<2x32xf32>
    %66 = arith.mulf %60, %60 : vector<2x32xf32>
    %cst_17 = arith.constant dense<0.000000e+00> : vector<2xf32>
    %67 = vector.multi_reduction <add>, %66, %cst_17 [1] : vector<2x32xf32> to vector<2xf32>
    %68 = vector.shape_cast %67 : vector<2xf32> to vector<2x1xf32>
    %cst_18 = arith.constant 9.99999996E-13 : f32
    %69 = vector.broadcast %cst_18 : f32 to vector<2x1xf32>
    %70 = arith.addf %68, %69 : vector<2x1xf32>
    %71 = math.rsqrt %70 : vector<2x1xf32>
    %72 = vector.broadcast %71 : vector<2x1xf32> to vector<2x32xf32>
    %73 = arith.mulf %60, %72 : vector<2x32xf32>
    %74 = arith.mulf %65, %65 : vector<2x32xf32>
    %cst_19 = arith.constant dense<0.000000e+00> : vector<2xf32>
    %75 = vector.multi_reduction <add>, %74, %cst_19 [1] : vector<2x32xf32> to vector<2xf32>
    %76 = vector.shape_cast %75 : vector<2xf32> to vector<2x1xf32>
    %cst_20 = arith.constant 9.99999996E-13 : f32
    %77 = vector.broadcast %cst_20 : f32 to vector<2x1xf32>
    %78 = arith.addf %76, %77 : vector<2x1xf32>
    %79 = math.rsqrt %78 : vector<2x1xf32>
    %80 = vector.broadcast %79 : vector<2x1xf32> to vector<2x32xf32>
    %81 = arith.mulf %65, %80 : vector<2x32xf32>
    %cst_21 = arith.constant dense<0.000000e+00> : vector<2x2xf32>
    %82 = tpu.matmul %73, %81, %cst_21 {dimension_numbers = #tpu.dot_dimension_numbers<[1], [1], [0], [0], [0, 0, 1, 0], [], []>} : vector<2x32xf32>, vector<2x32xf32>, vector<2x2xf32> -> vector<2x2xf32>
    %cst_22 = arith.constant 14.2857141 : f32
    %83 = vector.broadcast %cst_22 : f32 to vector<2x2xf32>
    %84 = arith.mulf %83, %82 : vector<2x2xf32>
    %cst_23 = arith.constant 1.000000e+02 : f32
    %85 = vector.broadcast %cst_23 : f32 to vector<2x2xf32>
    %86 = arith.divf %84, %85 : vector<2x2xf32>
    %cst_24 = arith.constant 1.000000e+00 : f32
    %87 = vector.broadcast %cst_24 : f32 to vector<2x2xf32>
    %88 = arith.subf %87, %86 : vector<2x2xf32>
    %c0_25 = arith.constant 0 : index
    %c0_26 = arith.constant 0 : index
    %89 = vector.load %arg8[%c0_25, %c0_26] : memref<2x2xf32, #tpu.memory_space<vmem>>, vector<2x2xf32>
    tpu.vector_store %arg8[%c0_25, %c0_26], %88 {strides = array<i32>} : memref<2x2xf32, #tpu.memory_space<vmem>>, vector<2x2xf32>,
    return
  }
  func.func @transform_0(%arg0: i32) -> (i32, i32) {
    %c0_i32 = arith.constant 0 : i32
    %c0_i32_0 = arith.constant 0 : i32
    %c0_i32_1 = arith.constant 0 : i32
    return %c0_i32, %c0_i32_0 : i32, i32
  }
  func.func @transform_1(%arg0: i32) -> (i32, i32) {
    %c0_i32 = arith.constant 0 : i32
    %c0_i32_0 = arith.constant 0 : i32
    %c0_i32_1 = arith.constant 0 : i32
    return %c0_i32, %c0_i32_0 : i32, i32
  }
  func.func @transform_2(%arg0: i32) -> (i32, i32) {
    %c0_i32 = arith.constant 0 : i32
    %c0_i32_0 = arith.constant 0 : i32
    %c0_i32_1 = arith.constant 0 : i32
    return %c0_i32, %c0_i32_0 : i32, i32
  }
  func.func @transform_3(%arg0: i32) -> (i32, i32) {
    %c0_i32 = arith.constant 0 : i32
    %c0_i32_0 = arith.constant 0 : i32
    %c0_i32_1 = arith.constant 0 : i32
    return %c0_i32, %c0_i32_0 : i32, i32
  }
  func.func @transform_4(%arg0: i32) -> (i32, i32) {
    %c0_i32 = arith.constant 0 : i32
    %c0_i32_0 = arith.constant 0 : i32
    %c0_i32_1 = arith.constant 0 : i32
    return %c0_i32, %c0_i32_0 : i32, i32
  }
  func.func @transform_5(%arg0: i32) -> (i32, i32) {
    %c0_i32 = arith.constant 0 : i32
    %c0_i32_0 = arith.constant 0 : i32
    %c0_i32_1 = arith.constant 0 : i32
    return %c0_i32, %c0_i32_0 : i32, i32
  }
  func.func @transform_6(%arg0: i32) -> (i32, i32) {
    %c0_i32 = arith.constant 0 : i32
    %c0_i32_0 = arith.constant 0 : i32
    %c0_i32_1 = arith.constant 0 : i32
    return %c0_i32, %c0_i32_0 : i32, i32
  }
  func.func @transform_7(%arg0: i32) -> (i32, i32) {
    %c0_i32 = arith.constant 0 : i32
    %c0_i32_0 = arith.constant 0 : i32
    %c0_i32_1 = arith.constant 0 : i32
    return %c0_i32, %c0_i32_0 : i32, i32
  }
}

</mosaic_0001>

<llo_original>
// kernel: tpu_custom_call.1
$region0: #{tpu_custom_call.1}
  #allocation0 [shape = 'u32[]', space=smem, size = 0x4, offset = 0x4, fixed_abs, tag = 'smem constant byte address 0x4 - core index']
  #allocation1 [shape = 'u32[144,128]{1,0:T(1,128)}', space=vmem, size = 0x12000, scoped, tag = 'internal scratch']
  %s0 = inlined_call_operand.vmem [shape: s32[2,8], index: 0, kind: input, shape index: {}]
  %s1 = inlined_call_operand.vmem [shape: f32[2,1536], index: 1, kind: input, shape index: {}]
  %s2 = inlined_call_operand.vmem [shape: f32[49,16], index: 2, kind: input, shape index: {}]
  %s3 = inlined_call_operand.vmem [shape: f32[1536,32], index: 3, kind: input, shape index: {}]
  %s4 = inlined_call_operand.vmem [shape: f32[1,32], index: 4, kind: input, shape index: {}]
  %s5 = inlined_call_operand.vmem [shape: f32[16,32], index: 5, kind: input, shape index: {}]
  %s6 = inlined_call_operand.vmem [shape: f32[1,32], index: 6, kind: input, shape index: {}]
  %s7 = inlined_call_operand.hbm [shape: f32[2,2], index: 7, kind: output, shape index: {}]
  %s8 = sld [smem:[#allocation0]]
  $region38: #{tpu_custom_call.1} parent=0
    _
  %s10 = ssub.s32 1, %s8
  %s11 = scalar_select 0, %s10, %s8
  $region1: #{tpu_custom_call.1} parent=0
    #allocation2 [shape = 'u8[1024]{0}', space=vmem, size = 0x400, scoped, tag = 'output window, operand 0, single buffered']
    #allocation3 [shape = 's32[1]{0}', space=sflag, size = 0x4, scoped, tag = 'scoped memory for tpu_custom_call.1']
    %12 = vsyncpa [#allocation3], 0
    // Predicated region
    $region2: #{tpu_custom_call.1} parent=1 // pred_check
      _
    $region3: #{tpu_custom_call.1} parent=1 // pred_check_branch
      %14 = sbr.rel (0) target = $region5
    $region4: #{tpu_custom_call.1} parent=1 // pred_region
      _
    $region5: #{tpu_custom_call.1} parent=1 // pred_fallthru
      _
    // Predicated region
    $region6: #{tpu_custom_call.1} parent=1 // pred_check
      _
    $region7: #{tpu_custom_call.1} parent=1 // pred_check_branch
      %16 = sbr.rel (0) target = $region9
    $region8: #{tpu_custom_call.1} parent=1 // pred_region
      _
    $region9: #{tpu_custom_call.1} parent=1 // pred_fallthru
      _
    // Predicated region
    $region10: #{tpu_custom_call.1} parent=1 // pred_check
      _
    $region11: #{tpu_custom_call.1} parent=1 // pred_check_branch
      %18 = sbr.rel (0) target = $region13
    $region12: #{tpu_custom_call.1} parent=1 // pred_region
      _
    $region13: #{tpu_custom_call.1} parent=1 // pred_fallthru
      _
    // Predicated region
    $region14: #{tpu_custom_call.1} parent=1 // pred_check
      _
    $region15: #{tpu_custom_call.1} parent=1 // pred_check_branch
      %20 = sbr.rel (0) target = $region17
    $region16: #{tpu_custom_call.1} parent=1 // pred_region
      _
    $region17: #{tpu_custom_call.1} parent=1 // pred_fallthru
      _
    // Predicated region
    $region18: #{tpu_custom_call.1} parent=1 // pred_check
      _
    $region19: #{tpu_custom_call.1} parent=1 // pred_check_branch
      %22 = sbr.rel (0) target = $region21
    $region20: #{tpu_custom_call.1} parent=1 // pred_region
      _
    $region21: #{tpu_custom_call.1} parent=1 // pred_fallthru
      _
    // Predicated region
    $region22: #{tpu_custom_call.1} parent=1 // pred_check
      _
    $region23: #{tpu_custom_call.1} parent=1 // pred_check_branch
      %24 = sbr.rel (0) target = $region25
    $region24: #{tpu_custom_call.1} parent=1 // pred_region
      _
    $region25: #{tpu_custom_call.1} parent=1 // pred_fallthru
      _
    // Predicated region
    $region26: #{tpu_custom_call.1} parent=1 // pred_check
      _
    $region27: #{tpu_custom_call.1} parent=1 // pred_check_branch
      %26 = sbr.rel (0) target = $region29
    $region28: #{tpu_custom_call.1} parent=1 // pred_region
      _
    $region29: #{tpu_custom_call.1} parent=1 // pred_fallthru
      _
    %v27 = vld [vmem:[%s0] sm:$0x3]
    %v28 = vlaneseq
    %v29 = vand.u32 %v28, 127
    %30 = vset.pattern.permute.xlu0 0
    %31 = vperm.xlu0 %30, %v27
    %v32 = vpop.permute.xlu0 %31
    %vm33 = vcmp.eq.s32.totalorder %v32, %v29
    %v34 = vsel %vm33, 1, 0
    %v35 = vcvt.s32.f32 %v34
    %v36 = vadd.f32 %v35, 0.0
    %37 = vset.pattern.permute.xlu0 1
    %38 = vperm.xlu0 %37, %v27
    %v39 = vpop.permute.xlu0 %38
    %vm40 = vcmp.eq.s32.totalorder %v39, %v29
    %v41 = vsel %vm40, 1, 0
    %v42 = vcvt.s32.f32 %v41
    %v43 = vadd.f32 %v36, %v42
    %44 = vset.pattern.permute.xlu0 2
    %45 = vperm.xlu0 %44, %v27
    %v46 = vpop.permute.xlu0 %45
    %vm47 = vcmp.eq.s32.totalorder %v46, %v29
    %v48 = vsel %vm47, 1, 0
    %v49 = vcvt.s32.f32 %v48
    %v50 = vadd.f32 %v43, %v49
    %51 = vset.pattern.permute.xlu0 3
    %52 = vperm.xlu0 %51, %v27
    %v53 = vpop.permute.xlu0 %52
    %vm54 = vcmp.eq.s32.totalorder %v53, %v29
    %v55 = vsel %vm54, 1, 0
    %v56 = vcvt.s32.f32 %v55
    %v57 = vadd.f32 %v50, %v56
    %58 = vset.pattern.permute.xlu0 4
    %59 = vperm.xlu0 %58, %v27
    %v60 = vpop.permute.xlu0 %59
    %vm61 = vcmp.eq.s32.totalorder %v60, %v29
    %v62 = vsel %vm61, 1, 0
    %v63 = vcvt.s32.f32 %v62
    %v64 = vadd.f32 %v57, %v63
    %65 = vset.pattern.permute.xlu0 5
    %66 = vperm.xlu0 %65, %v27
    %v67 = vpop.permute.xlu0 %66
    %vm68 = vcmp.eq.s32.totalorder %v67, %v29
    %v69 = vsel %vm68, 1, 0
    %v70 = vcvt.s32.f32 %v69
    %v71 = vadd.f32 %v64, %v70
    %72 = vset.pattern.permute.xlu0 6
    %73 = vperm.xlu0 %72, %v27
    %v74 = vpop.permute.xlu0 %73
    %vm75 = vcmp.eq.s32.totalorder %v74, %v29
    %v76 = vsel %vm75, 1, 0
    %v77 = vcvt.s32.f32 %v76
    %v78 = vadd.f32 %v71, %v77
    %79 = vset.pattern.permute.xlu0 7
    %80 = vperm.xlu0 %79, %v27
    %v81 = vpop.permute.xlu0 %80
    %vm82 = vcmp.eq.s32.totalorder %v81, %v29
    %v83 = vsel %vm82, 1, 0
    %v84 = vcvt.s32.f32 %v83
    %v85 = vadd.f32 %v78, %v84
    %v86 = vld [vmem:[%s2] sm:$0xff]
    %v87 = vld [vmem:[%s2 + $0x8] sm:$0xff]
    %v88 = vld [vmem:[%s2 + $0x10] sm:$0xff]
    %v89 = vld [vmem:[%s2 + $0x18] sm:$0xff]
    %v90 = vld [vmem:[%s2 + $0x20] sm:$0xff]
    %v91 = vld [vmem:[%s2 + $0x28] sm:$0xff]
    %v92 = vld [vmem:[%s2 + $0x30] sm:$0x1]
    %vm93 = vcmask 400384
    %v95 = vsel %vm93, %v85, 0
    %vm97 = vcmask 1040384
    %v99 = vsel %vm97, %v92, 0
    %101 = vmatprep.subr.mxu0 0.0
    %102 = vmatpush1.msra.mxu0 %v86
    %103 = vmatprep.subr.mxu0 0.0
    %104 = vmatpush1.msra.mxu0 %v87
    %105 = vmatprep.subr.mxu0 0.0
    %106 = vmatpush1.msra.mxu0 %v88
    %107 = vmatprep.subr.mxu0 0.0
    %108 = vmatpush1.msra.mxu0 %v89
    %109 = vmatprep.subr.mxu0 0.0
    %110 = vmatpush1.msra.mxu0 %v90
    %111 = vmatprep.subr.mxu0 0.0
    %112 = vmatpush1.msra.mxu0 %v91
    %113 = vmatprep.subr.mxu0 0.0
    %114 = vmatpush1.msra.mxu0 %v99
    %115 = vmatprep.subr.mxu0 0.0
    %116 = vmatpush1.msra.mxu0 0.0
    %117 = vmatprep.subr.mxu0 0.0
    %118 = vmatpush1.msra.mxu0 0.0
    %119 = vmatprep.subr.mxu0 0.0
    %120 = vmatpush1.msra.mxu0 0.0
    %121 = vmatprep.subr.mxu0 0.0
    %122 = vmatpush1.msra.mxu0 0.0
    %123 = vmatprep.subr.mxu0 0.0
    %124 = vmatpush1.msra.mxu0 0.0
    %125 = vmatprep.subr.mxu0 0.0
    %126 = vmatpush1.msra.mxu0 0.0
    %127 = vmatprep.subr.mxu0 0.0
    %128 = vmatpush1.msra.mxu0 0.0
    %129 = vmatprep.subr.mxu0 0.0
    %130 = vmatpush1.msra.mxu0 0.0
    %131 = vmatprep.subr.mxu0 0.0
    %132 = vmatpush1.msra.mxu0 0.0
    %133 = vmatprep.subr.mxu0 0.0
    %134 = vmatpush1.msra.mxu0 0.0
    %135 = vmatprep.subr.mxu0 0.0
    %136 = vmatpush1.msra.mxu0 0.0
    %137 = vmatprep.subr.mxu0 0.0
    %138 = vmatpush1.msra.mxu0 0.0
    %139 = vmatprep.subr.mxu0 0.0
    %140 = vmatpush1.msra.mxu0 0.0
    %141 = vmatprep.subr.mxu0 0.0
    %142 = vmatpush1.msra.mxu0 0.0
    %143 = vmatprep.subr.mxu0 0.0
    %144 = vmatpush1.msra.mxu0 0.0
    %145 = vmatprep.subr.mxu0 0.0
    %146 = vmatpush1.msra.mxu0 0.0
    %147 = vmatprep.subr.mxu0 0.0
    %148 = vmatpush1.msra.mxu0 0.0
    %149 = vmatprep.subr.mxu0 0.0
    %150 = vmatpush1.msra.mxu0 0.0
    %151 = vmatprep.subr.mxu0 0.0
    %152 = vmatpush1.msra.mxu0 0.0
    %153 = vmatprep.subr.mxu0 0.0
    %154 = vmatpush1.msra.mxu0 0.0
    %155 = vmatprep.subr.mxu0 0.0
    %156 = vmatpush1.msra.mxu0 0.0
    %157 = vmatprep.subr.mxu0 0.0
    %158 = vmatpush1.msra.mxu0 0.0
    %159 = vmatprep.subr.mxu0 0.0
    %160 = vmatpush1.msra.mxu0 0.0
    %161 = vmatprep.subr.mxu0 0.0
    %162 = vmatpush1.msra.mxu0 0.0
    %163 = vmatprep.subr.mxu0 0.0
    %164 = vmatpush1.msra.mxu0 0.0
    %165 = vmatprep.mubr.f32.mxu0 0.0
    %166 = vmatmul.mubr.f32.gmra.mrb[0].mxu0 %v95
    %v167 = vpop.f32.mrb[0].mxu0
    %v168 = vadd.f32 0.0, %v167
    %v169 = vpop.f32.mrb[0].mxu0
    %170 = vdwg.mxu0
    %v171 = vmul.f32 %v168, 0.125
    %v172 = vld [vmem:[%s1] sm:$0xff]
    %v173 = vld [vmem:[%s1 + $0x8] sm:$0xff]
    %v174 = vld [vmem:[%s1 + $0x10] sm:$0xff]
    %v175 = vld [vmem:[%s3] sm:$0xff]
    %v176 = vld [vmem:[%s3 + $0x8] sm:$0xff]
    %v177 = vld [vmem:[%s3 + $0x10] sm:$0xff]
    %v178 = vld [vmem:[%s3 + $0x18] sm:$0xff]
    %v179 = vld [vmem:[%s3 + $0x20] sm:$0xff]
    %v180 = vld [vmem:[%s3 + $0x28] sm:$0xff]
    %v181 = vld [vmem:[%s3 + $0x30] sm:$0xff]
    %v182 = vld [vmem:[%s3 + $0x38] sm:$0xff]
    %v183 = vld [vmem:[%s3 + $0x40] sm:$0xff]
    %v184 = vld [vmem:[%s3 + $0x48] sm:$0xff]
    %v185 = vld [vmem:[%s3 + $0x50] sm:$0xff]
    %v186 = vld [vmem:[%s3 + $0x58] sm:$0xff]
    %v187 = vld [vmem:[%s3 + $0x60] sm:$0xff]
    %v188 = vld [vmem:[%s3 + $0x68] sm:$0xff]
    %v189 = vld [vmem:[%s3 + $0x70] sm:$0xff]
    %v190 = vld [vmem:[%s3 + $0x78] sm:$0xff]
    %v191 = vld [vmem:[%s3 + $0x80] sm:$0xff]
    %v192 = vld [vmem:[%s3 + $0x88] sm:$0xff]
    %v193 = vld [vmem:[%s3 + $0x90] sm:$0xff]
    %v194 = vld [vmem:[%s3 + $0x98] sm:$0xff]
    %v195 = vld [vmem:[%s3 + $0xa0] sm:$0xff]
    %v196 = vld [vmem:[%s3 + $0xa8] sm:$0xff]
    %v197 = vld [vmem:[%s3 + $0xb0] sm:$0xff]
    %v198 = vld [vmem:[%s3 + $0xb8] sm:$0xff]
    %v199 = vld [vmem:[%s3 + $0xc0] sm:$0xff]
    %v200 = vld [vmem:[%s3 + $0xc8] sm:$0xff]
    %v201 = vld [vmem:[%s3 + $0xd0] sm:$0xff]
    %v202 = vld [vmem:[%s3 + $0xd8] sm:$0xff]
    %v203 = vld [vmem:[%s3 + $0xe0] sm:$0xff]
    %v204 = vld [vmem:[%s3 + $0xe8] sm:$0xff]
    %v205 = vld [vmem:[%s3 + $0xf0] sm:$0xff]
    %v206 = vld [vmem:[%s3 + $0xf8] sm:$0xff]
    %v207 = vld [vmem:[%s3 + $0x100] sm:$0xff]
    %v208 = vld [vmem:[%s3 + $0x108] sm:$0xff]
    %v209 = vld [vmem:[%s3 + $0x110] sm:$0xff]
    %v210 = vld [vmem:[%s3 + $0x118] sm:$0xff]
    %v211 = vld [vmem:[%s3 + $0x120] sm:$0xff]
    %v212 = vld [vmem:[%s3 + $0x128] sm:$0xff]
    %v213 = vld [vmem:[%s3 + $0x130] sm:$0xff]
    %v214 = vld [vmem:[%s3 + $0x138] sm:$0xff]
    %v215 = vld [vmem:[%s3 + $0x140] sm:$0xff]
    %v216 = vld [vmem:[%s3 + $0x148] sm:$0xff]
    %v217 = vld [vmem:[%s3 + $0x150] sm:$0xff]
    %v218 = vld [vmem:[%s3 + $0x158] sm:$0xff]
    %v219 = vld [vmem:[%s3 + $0x160] sm:$0xff]
    %v220 = vld [vmem:[%s3 + $0x168] sm:$0xff]
    %v221 = vld [vmem:[%s3 + $0x170] sm:$0xff]
    %v222 = vld [vmem:[%s3 + $0x178] sm:$0xff]
    %v223 = vld [vmem:[%s3 + $0x180] sm:$0xff]
    %v224 = vld [vmem:[%s3 + $0x188] sm:$0xff]
    %v225 = vld [vmem:[%s3 + $0x190] sm:$0xff]
    %v226 = vld [vmem:[%s3 + $0x198] sm:$0xff]
    %v227 = vld [vmem:[%s3 + $0x1a0] sm:$0xff]
    %v228 = vld [vmem:[%s3 + $0x1a8] sm:$0xff]
    %v229 = vld [vmem:[%s3 + $0x1b0] sm:$0xff]
    %v230 = vld [vmem:[%s3 + $0x1b8] sm:$0xff]
    %v231 = vld [vmem:[%s3 + $0x1c0] sm:$0xff]
    %v232 = vld [vmem:[%s3 + $0x1c8] sm:$0xff]
    %v233 = vld [vmem:[%s3 + $0x1d0] sm:$0xff]
    %v234 = vld [vmem:[%s3 + $0x1d8] sm:$0xff]
    %v235 = vld [vmem:[%s3 + $0x1e0] sm:$0xff]
    %v236 = vld [vmem:[%s3 + $0x1e8] sm:$0xff]
    %v237 = vld [vmem:[%s3 + $0x1f0] sm:$0xff]
    %v238 = vld [vmem:[%s3 + $0x1f8] sm:$0xff]
    %v239 = vld [vmem:[%s3 + $0x200] sm:$0xff]
    %v240 = vld [vmem:[%s3 + $0x208] sm:$0xff]
    %v241 = vld [vmem:[%s3 + $0x210] sm:$0xff]
    %v242 = vld [vmem:[%s3 + $0x218] sm:$0xff]
    %v243 = vld [vmem:[%s3 + $0x220] sm:$0xff]
    %v244 = vld [vmem:[%s3 + $0x228] sm:$0xff]
    %v245 = vld [vmem:[%s3 + $0x230] sm:$0xff]
    %v246 = vld [vmem:[%s3 + $0x238] sm:$0xff]
    %v247 = vld [vmem:[%s3 + $0x240] sm:$0xff]
    %v248 = vld [vmem:[%s3 + $0x248] sm:$0xff]
    %v249 = vld [vmem:[%s3 + $0x250] sm:$0xff]
    %v250 = vld [vmem:[%s3 + $0x258] sm:$0xff]
    %v251 = vld [vmem:[%s3 + $0x260] sm:$0xff]
    %v252 = vld [vmem:[%s3 + $0x268] sm:$0xff]
    %v253 = vld [vmem:[%s3 + $0x270] sm:$0xff]
    %v254 = vld [vmem:[%s3 + $0x278] sm:$0xff]
    %v255 = vld [vmem:[%s3 + $0x280] sm:$0xff]
    %v256 = vld [vmem:[%s3 + $0x288] sm:$0xff]
    %v257 = vld [vmem:[%s3 + $0x290] sm:$0xff]
    %v258 = vld [vmem:[%s3 + $0x298] sm:$0xff]
    %v259 = vld [vmem:[%s3 + $0x2a0] sm:$0xff]
    %v260 = vld [vmem:[%s3 + $0x2a8] sm:$0xff]
    %v261 = vld [vmem:[%s3 + $0x2b0] sm:$0xff]
    %v262 = vld [vmem:[%s3 + $0x2b8] sm:$0xff]
    %v263 = vld [vmem:[%s3 + $0x2c0] sm:$0xff]
    %v264 = vld [vmem:[%s3 + $0x2c8] sm:$0xff]
    %v265 = vld [vmem:[%s3 + $0x2d0] sm:$0xff]
    %v266 = vld [vmem:[%s3 + $0x2d8] sm:$0xff]
    %v267 = vld [vmem:[%s3 + $0x2e0] sm:$0xff]
    %v268 = vld [vmem:[%s3 + $0x2e8] sm:$0xff]
    %v269 = vld [vmem:[%s3 + $0x2f0] sm:$0xff]
    %v270 = vld [vmem:[%s3 + $0x2f8] sm:$0xff]
    %v271 = vld [vmem:[%s3 + $0x300] sm:$0xff]
    %v272 = vld [vmem:[%s3 + $0x308] sm:$0xff]
    %v273 = vld [vmem:[%s3 + $0x310] sm:$0xff]
    %v274 = vld [vmem:[%s3 + $0x318] sm:$0xff]
    %v275 = vld [vmem:[%s3 + $0x320] sm:$0xff]
    %v276 = vld [vmem:[%s3 + $0x328] sm:$0xff]
    %v277 = vld [vmem:[%s3 + $0x330] sm:$0xff]
    %v278 = vld [vmem:[%s3 + $0x338] sm:$0xff]
    %v279 = vld [vmem:[%s3 + $0x340] sm:$0xff]
    %v280 = vld [vmem:[%s3 + $0x348] sm:$0xff]
    %v281 = vld [vmem:[%s3 + $0x350] sm:$0xff]
    %v282 = vld [vmem:[%s3 + $0x358] sm:$0xff]
    %v283 = vld [vmem:[%s3 + $0x360] sm:$0xff]
    %v284 = vld [vmem:[%s3 + $0x368] sm:$0xff]
    %v285 = vld [vmem:[%s3 + $0x370] sm:$0xff]
    %v286 = vld [vmem:[%s3 + $0x378] sm:$0xff]
    %v287 = vld [vmem:[%s3 + $0x380] sm:$0xff]
    %v288 = vld [vmem:[%s3 + $0x388] sm:$0xff]
    %v289 = vld [vmem:[%s3 + $0x390] sm:$0xff]
    %v290 = vld [vmem:[%s3 + $0x398] sm:$0xff]
    %v291 = vld [vmem:[%s3 + $0x3a0] sm:$0xff]
    %v292 = vld [vmem:[%s3 + $0x3a8] sm:$0xff]
    %v293 = vld [vmem:[%s3 + $0x3b0] sm:$0xff]
    %v294 = vld [vmem:[%s3 + $0x3b8] sm:$0xff]
    %v295 = vld [vmem:[%s3 + $0x3c0] sm:$0xff]
    %v296 = vld [vmem:[%s3 + $0x3c8] sm:$0xff]
    %v297 = vld [vmem:[%s3 + $0x3d0] sm:$0xff]
    %v298 = vld [vmem:[%s3 + $0x3d8] sm:$0xff]
    %v299 = vld [vmem:[%s3 + $0x3e0] sm:$0xff]
    %v300 = vld [vmem:[%s3 + $0x3e8] sm:$0xff]
    %v301 = vld [vmem:[%s3 + $0x3f0] sm:$0xff]
    %v302 = vld [vmem:[%s3 + $0x3f8] sm:$0xff]
    %v303 = vld [vmem:[%s3 + $0x400] sm:$0xff]
    %v304 = vld [vmem:[%s3 + $0x408] sm:$0xff]
    %v305 = vld [vmem:[%s3 + $0x410] sm:$0xff]
    %v306 = vld [vmem:[%s3 + $0x418] sm:$0xff]
    %v307 = vld [vmem:[%s3 + $0x420] sm:$0xff]
    %v308 = vld [vmem:[%s3 + $0x428] sm:$0xff]
    %v309 = vld [vmem:[%s3 + $0x430] sm:$0xff]
    %v310 = vld [vmem:[%s3 + $0x438] sm:$0xff]
    %v311 = vld [vmem:[%s3 + $0x440] sm:$0xff]
    %v312 = vld [vmem:[%s3 + $0x448] sm:$0xff]
    %v313 = vld [vmem:[%s3 + $0x450] sm:$0xff]
    %v314 = vld [vmem:[%s3 + $0x458] sm:$0xff]
    %v315 = vld [vmem:[%s3 + $0x460] sm:$0xff]
    %v316 = vld [vmem:[%s3 + $0x468] sm:$0xff]
    %v317 = vld [vmem:[%s3 + $0x470] sm:$0xff]
    %v318 = vld [vmem:[%s3 + $0x478] sm:$0xff]
    %v319 = vld [vmem:[%s3 + $0x480] sm:$0xff]
    %v320 = vld [vmem:[%s3 + $0x488] sm:$0xff]
    %v321 = vld [vmem:[%s3 + $0x490] sm:$0xff]
    %v322 = vld [vmem:[%s3 + $0x498] sm:$0xff]
    %v323 = vld [vmem:[%s3 + $0x4a0] sm:$0xff]
    %v324 = vld [vmem:[%s3 + $0x4a8] sm:$0xff]
    %v325 = vld [vmem:[%s3 + $0x4b0] sm:$0xff]
    %v326 = vld [vmem:[%s3 + $0x4b8] sm:$0xff]
    %v327 = vld [vmem:[%s3 + $0x4c0] sm:$0xff]
    %v328 = vld [vmem:[%s3 + $0x4c8] sm:$0xff]
    %v329 = vld [vmem:[%s3 + $0x4d0] sm:$0xff]
    %v330 = vld [vmem:[%s3 + $0x4d8] sm:$0xff]
    %v331 = vld [vmem:[%s3 + $0x4e0] sm:$0xff]
    %v332 = vld [vmem:[%s3 + $0x4e8] sm:$0xff]
    %v333 = vld [vmem:[%s3 + $0x4f0] sm:$0xff]
    %v334 = vld [vmem:[%s3 + $0x4f8] sm:$0xff]
    %v335 = vld [vmem:[%s3 + $0x500] sm:$0xff]
    %v336 = vld [vmem:[%s3 + $0x508] sm:$0xff]
    %v337 = vld [vmem:[%s3 + $0x510] sm:$0xff]
    %v338 = vld [vmem:[%s3 + $0x518] sm:$0xff]
    %v339 = vld [vmem:[%s3 + $0x520] sm:$0xff]
    %v340 = vld [vmem:[%s3 + $0x528] sm:$0xff]
    %v341 = vld [vmem:[%s3 + $0x530] sm:$0xff]
    %v342 = vld [vmem:[%s3 + $0x538] sm:$0xff]
    %v343 = vld [vmem:[%s3 + $0x540] sm:$0xff]
    %v344 = vld [vmem:[%s3 + $0x548] sm:$0xff]
    %v345 = vld [vmem:[%s3 + $0x550] sm:$0xff]
    %v346 = vld [vmem:[%s3 + $0x558] sm:$0xff]
    %v347 = vld [vmem:[%s3 + $0x560] sm:$0xff]
    %v348 = vld [vmem:[%s3 + $0x568] sm:$0xff]
    %v349 = vld [vmem:[%s3 + $0x570] sm:$0xff]
    %v350 = vld [vmem:[%s3 + $0x578] sm:$0xff]
    %v351 = vld [vmem:[%s3 + $0x580] sm:$0xff]
    %v352 = vld [vmem:[%s3 + $0x588] sm:$0xff]
    %v353 = vld [vmem:[%s3 + $0x590] sm:$0xff]
    %v354 = vld [vmem:[%s3 + $0x598] sm:$0xff]
    %v355 = vld [vmem:[%s3 + $0x5a0] sm:$0xff]
    %v356 = vld [vmem:[%s3 + $0x5a8] sm:$0xff]
    %v357 = vld [vmem:[%s3 + $0x5b0] sm:$0xff]
    %v358 = vld [vmem:[%s3 + $0x5b8] sm:$0xff]
    %v359 = vld [vmem:[%s3 + $0x5c0] sm:$0xff]
    %v360 = vld [vmem:[%s3 + $0x5c8] sm:$0xff]
    %v361 = vld [vmem:[%s3 + $0x5d0] sm:$0xff]
    %v362 = vld [vmem:[%s3 + $0x5d8] sm:$0xff]
    %v363 = vld [vmem:[%s3 + $0x5e0] sm:$0xff]
    %v364 = vld [vmem:[%s3 + $0x5e8] sm:$0xff]
    %v365 = vld [vmem:[%s3 + $0x5f0] sm:$0xff]
    %v366 = vld [vmem:[%s3 + $0x5f8] sm:$0xff]
    %v367 = vld [vmem:[%s4] sm:$0x1]
    %v369 = vlaneseq
    %v370 = vshrl.u32 %v369, 7
    %v371 = vsub.s32 0, %v370
    %v372 = vrot.slane %v367, %v371
    %v377 = vcombine.high %v172, %v172
    %v379 = vunpack.c.l.s4 1983009808
    %v380 = vunpack.c.0.s8 %v379
    %v381 = vlaneseq
    %v382 = vshrl.u32 %v381, 7
    %v383 = vsub.s32 %v380, %v382
    %v384 = vrot.slane %v172, %v383
    %v386 = vunpack.c.l.s4 1983009808
    %v387 = vunpack.c.0.s8 %v386
    %v388 = vlaneseq
    %v389 = vshrl.u32 %v388, 7
    %v390 = vsub.s32 %v387, %v389
    %v391 = vrot.slane %v377, %v390
    %v392 = vcombine.high %v384, %v384
    %v393 = vcombine.high %v391, %v391
    %v394 = vcombine.high %v173, %v173
    %v396 = vunpack.c.l.s4 1983009808
    %v397 = vunpack.c.0.s8 %v396
    %v398 = vlaneseq
    %v399 = vshrl.u32 %v398, 7
    %v400 = vsub.s32 %v397, %v399
    %v401 = vrot.slane %v173, %v400
    %v403 = vunpack.c.l.s4 1983009808
    %v404 = vunpack.c.0.s8 %v403
    %v405 = vlaneseq
    %v406 = vshrl.u32 %v405, 7
    %v407 = vsub.s32 %v404, %v406
    %v408 = vrot.slane %v394, %v407
    %v409 = vcombine.high %v401, %v401
    %v410 = vcombine.high %v408, %v408
    %v411 = vcombine.high %v174, %v174
    %v413 = vunpack.c.l.s4 1983009808
    %v414 = vunpack.c.0.s8 %v413
    %v415 = vlaneseq
    %v416 = vshrl.u32 %v415, 7
    %v417 = vsub.s32 %v414, %v416
    %v418 = vrot.slane %v174, %v417
    %v420 = vunpack.c.l.s4 1983009808
    %v421 = vunpack.c.0.s8 %v420
    %v422 = vlaneseq
    %v423 = vshrl.u32 %v422, 7
    %v424 = vsub.s32 %v421, %v423
    %v425 = vrot.slane %v411, %v424
    %v426 = vcombine.high %v418, %v418
    %v427 = vcombine.high %v425, %v425
    %440 = vmatprep.subr.mxu0 0.0
    %441 = vmatpush1.msra.mxu0 %v175
    %442 = vmatprep.subr.mxu0 0.0
    %443 = vmatpush1.msra.mxu0 %v176
    %444 = vmatprep.subr.mxu0 0.0
    %445 = vmatpush1.msra.mxu0 %v177
    %446 = vmatprep.subr.mxu0 0.0
    %447 = vmatpush1.msra.mxu0 %v178
    %448 = vmatprep.subr.mxu0 0.0
    %449 = vmatpush1.msra.mxu0 %v179
    %450 = vmatprep.subr.mxu0 0.0
    %451 = vmatpush1.msra.mxu0 %v180
    %452 = vmatprep.subr.mxu0 0.0
    %453 = vmatpush1.msra.mxu0 %v181
    %454 = vmatprep.subr.mxu0 0.0
    %455 = vmatpush1.msra.mxu0 %v182
    %456 = vmatprep.subr.mxu0 0.0
    %457 = vmatpush1.msra.mxu0 %v183
    %458 = vmatprep.subr.mxu0 0.0
    %459 = vmatpush1.msra.mxu0 %v184
    %460 = vmatprep.subr.mxu0 0.0
    %461 = vmatpush1.msra.mxu0 %v185
    %462 = vmatprep.subr.mxu0 0.0
    %463 = vmatpush1.msra.mxu0 %v186
    %464 = vmatprep.subr.mxu0 0.0
    %465 = vmatpush1.msra.mxu0 %v187
    %466 = vmatprep.subr.mxu0 0.0
    %467 = vmatpush1.msra.mxu0 %v188
    %468 = vmatprep.subr.mxu0 0.0
    %469 = vmatpush1.msra.mxu0 %v189
    %470 = vmatprep.subr.mxu0 0.0
    %471 = vmatpush1.msra.mxu0 %v190
    %472 = vmatprep.subr.mxu0 0.0
    %473 = vmatpush1.msra.mxu0 %v191
    %474 = vmatprep.subr.mxu0 0.0
    %475 = vmatpush1.msra.mxu0 %v192
    %476 = vmatprep.subr.mxu0 0.0
    %477 = vmatpush1.msra.mxu0 %v193
    %478 = vmatprep.subr.mxu0 0.0
    %479 = vmatpush1.msra.mxu0 %v194
    %480 = vmatprep.subr.mxu0 0.0
    %481 = vmatpush1.msra.mxu0 %v195
    %482 = vmatprep.subr.mxu0 0.0
    %483 = vmatpush1.msra.mxu0 %v196
    %484 = vmatprep.subr.mxu0 0.0
    %485 = vmatpush1.msra.mxu0 %v197
    %486 = vmatprep.subr.mxu0 0.0
    %487 = vmatpush1.msra.mxu0 %v198
    %488 = vmatprep.subr.mxu0 0.0
    %489 = vmatpush1.msra.mxu0 %v199
    %490 = vmatprep.subr.mxu0 0.0
    %491 = vmatpush1.msra.mxu0 %v200
    %492 = vmatprep.subr.mxu0 0.0
    %493 = vmatpush1.msra.mxu0 %v201
    %494 = vmatprep.subr.mxu0 0.0
    %495 = vmatpush1.msra.mxu0 %v202
    %496 = vmatprep.subr.mxu0 0.0
    %497 = vmatpush1.msra.mxu0 %v203
    %498 = vmatprep.subr.mxu0 0.0
    %499 = vmatpush1.msra.mxu0 %v204
    %500 = vmatprep.subr.mxu0 0.0
    %501 = vmatpush1.msra.mxu0 %v205
    %502 = vmatprep.subr.mxu0 0.0
    %503 = vmatpush1.msra.mxu0 %v206
    %504 = vmatprep.mubr.f32.mxu0 %v392
    %505 = vmatmul.mubr.f32.gmra.mrb[0].mxu0 %v384
    %v506 = vpop.f32.mrb[0].mxu0
    %v507 = vadd.f32 %v372, %v506
    %v508 = vpop.f32.mrb[0].mxu0
    %509 = vdwg.mxu0
    %510 = vmatprep.subr.mxu0 0.0
    %511 = vmatpush1.msra.mxu0 %v207
    %512 = vmatprep.subr.mxu0 0.0
    %513 = vmatpush1.msra.mxu0 %v208
    %514 = vmatprep.subr.mxu0 0.0
    %515 = vmatpush1.msra.mxu0 %v209
    %516 = vmatprep.subr.mxu0 0.0
    %517 = vmatpush1.msra.mxu0 %v210
    %518 = vmatprep.subr.mxu0 0.0
    %519 = vmatpush1.msra.mxu0 %v211
    %520 = vmatprep.subr.mxu0 0.0
    %521 = vmatpush1.msra.mxu0 %v212
    %522 = vmatprep.subr.mxu0 0.0
    %523 = vmatpush1.msra.mxu0 %v213
    %524 = vmatprep.subr.mxu0 0.0
    %525 = vmatpush1.msra.mxu0 %v214
    %526 = vmatprep.subr.mxu0 0.0
    %527 = vmatpush1.msra.mxu0 %v215
    %528 = vmatprep.subr.mxu0 0.0
    %529 = vmatpush1.msra.mxu0 %v216
    %530 = vmatprep.subr.mxu0 0.0
    %531 = vmatpush1.msra.mxu0 %v217
    %532 = vmatprep.subr.mxu0 0.0
    %533 = vmatpush1.msra.mxu0 %v218
    %534 = vmatprep.subr.mxu0 0.0
    %535 = vmatpush1.msra.mxu0 %v219
    %536 = vmatprep.subr.mxu0 0.0
    %537 = vmatpush1.msra.mxu0 %v220
    %538 = vmatprep.subr.mxu0 0.0
    %539 = vmatpush1.msra.mxu0 %v221
    %540 = vmatprep.subr.mxu0 0.0
    %541 = vmatpush1.msra.mxu0 %v222
    %542 = vmatprep.subr.mxu0 0.0
    %543 = vmatpush1.msra.mxu0 %v223
    %544 = vmatprep.subr.mxu0 0.0
    %545 = vmatpush1.msra.mxu0 %v224
    %546 = vmatprep.subr.mxu0 0.0
    %547 = vmatpush1.msra.mxu0 %v225
    %548 = vmatprep.subr.mxu0 0.0
    %549 = vmatpush1.msra.mxu0 %v226
    %550 = vmatprep.subr.mxu0 0.0
    %551 = vmatpush1.msra.mxu0 %v227
    %552 = vmatprep.subr.mxu0 0.0
    %553 = vmatpush1.msra.mxu0 %v228
    %554 = vmatprep.subr.mxu0 0.0
    %555 = vmatpush1.msra.mxu0 %v229
    %556 = vmatprep.subr.mxu0 0.0
    %557 = vmatpush1.msra.mxu0 %v230
    %558 = vmatprep.subr.mxu0 0.0
    %559 = vmatpush1.msra.mxu0 %v231
    %560 = vmatprep.subr.mxu0 0.0
    %561 = vmatpush1.msra.mxu0 %v232
    %562 = vmatprep.subr.mxu0 0.0
    %563 = vmatpush1.msra.mxu0 %v233
    %564 = vmatprep.subr.mxu0 0.0
    %565 = vmatpush1.msra.mxu0 %v234
    %566 = vmatprep.subr.mxu0 0.0
    %567 = vmatpush1.msra.mxu0 %v235
    %568 = vmatprep.subr.mxu0 0.0
    %569 = vmatpush1.msra.mxu0 %v236
    %570 = vmatprep.subr.mxu0 0.0
    %571 = vmatpush1.msra.mxu0 %v237
    %572 = vmatprep.subr.mxu0 0.0
    %573 = vmatpush1.msra.mxu0 %v238
    %574 = vmatprep.mubr.f32.mxu0 %v393
    %575 = vmatmul.mubr.f32.gmra.mrb[0].mxu0 %v391
    %v576 = vpop.f32.mrb[0].mxu0
    %v577 = vadd.f32 %v507, %v576
    %v578 = vpop.f32.mrb[0].mxu0
    %579 = vdwg.mxu0
    %580 = vmatprep.subr.mxu0 0.0
    %581 = vmatpush1.msra.mxu0 %v239
    %582 = vmatprep.subr.mxu0 0.0
    %583 = vmatpush1.msra.mxu0 %v240
    %584 = vmatprep.subr.mxu0 0.0
    %585 = vmatpush1.msra.mxu0 %v241
    %586 = vmatprep.subr.mxu0 0.0
    %587 = vmatpush1.msra.mxu0 %v242
    %588 = vmatprep.subr.mxu0 0.0
    %589 = vmatpush1.msra.mxu0 %v243
    %590 = vmatprep.subr.mxu0 0.0
    %591 = vmatpush1.msra.mxu0 %v244
    %592 = vmatprep.subr.mxu0 0.0
    %593 = vmatpush1.msra.mxu0 %v245
    %594 = vmatprep.subr.mxu0 0.0
    %595 = vmatpush1.msra.mxu0 %v246
    %596 = vmatprep.subr.mxu0 0.0
    %597 = vmatpush1.msra.mxu0 %v247
    %598 = vmatprep.subr.mxu0 0.0
    %599 = vmatpush1.msra.mxu0 %v248
    %600 = vmatprep.subr.mxu0 0.0
    %601 = vmatpush1.msra.mxu0 %v249
    %602 = vmatprep.subr.mxu0 0.0
    %603 = vmatpush1.msra.mxu0 %v250
    %604 = vmatprep.subr.mxu0 0.0
    %605 = vmatpush1.msra.mxu0 %v251
    %606 = vmatprep.subr.mxu0 0.0
    %607 = vmatpush1.msra.mxu0 %v252
    %608 = vmatprep.subr.mxu0 0.0
    %609 = vmatpush1.msra.mxu0 %v253
    %610 = vmatprep.subr.mxu0 0.0
    %611 = vmatpush1.msra.mxu0 %v254
    %612 = vmatprep.subr.mxu0 0.0
    %613 = vmatpush1.msra.mxu0 %v255
    %614 = vmatprep.subr.mxu0 0.0
    %615 = vmatpush1.msra.mxu0 %v256
    %616 = vmatprep.subr.mxu0 0.0
    %617 = vmatpush1.msra.mxu0 %v257
    %618 = vmatprep.subr.mxu0 0.0
    %619 = vmatpush1.msra.mxu0 %v258
    %620 = vmatprep.subr.mxu0 0.0
    %621 = vmatpush1.msra.mxu0 %v259
    %622 = vmatprep.subr.mxu0 0.0
    %623 = vmatpush1.msra.mxu0 %v260
    %624 = vmatprep.subr.mxu0 0.0
    %625 = vmatpush1.msra.mxu0 %v261
    %626 = vmatprep.subr.mxu0 0.0
    %627 = vmatpush1.msra.mxu0 %v262
    %628 = vmatprep.subr.mxu0 0.0
    %629 = vmatpush1.msra.mxu0 %v263
    %630 = vmatprep.subr.mxu0 0.0
    %631 = vmatpush1.msra.mxu0 %v264
    %632 = vmatprep.subr.mxu0 0.0
    %633 = vmatpush1.msra.mxu0 %v265
    %634 = vmatprep.subr.mxu0 0.0
    %635 = vmatpush1.msra.mxu0 %v266
    %636 = vmatprep.subr.mxu0 0.0
    %637 = vmatpush1.msra.mxu0 %v267
    %638 = vmatprep.subr.mxu0 0.0
    %639 = vmatpush1.msra.mxu0 %v268
    %640 = vmatprep.subr.mxu0 0.0
    %641 = vmatpush1.msra.mxu0 %v269
    %642 = vmatprep.subr.mxu0 0.0
    %643 = vmatpush1.msra.mxu0 %v270
    %644 = vmatprep.mubr.f32.mxu0 %v409
    %645 = vmatmul.mubr.f32.gmra.mrb[0].mxu0 %v401
    %v646 = vpop.f32.mrb[0].mxu0
    %v647 = vadd.f32 %v577, %v646
    %v648 = vpop.f32.mrb[0].mxu0
    %649 = vdwg.mxu0
    %650 = vmatprep.subr.mxu0 0.0
    %651 = vmatpush1.msra.mxu0 %v271
    %652 = vmatprep.subr.mxu0 0.0
    %653 = vmatpush1.msra.mxu0 %v272
    %654 = vmatprep.subr.mxu0 0.0
    %655 = vmatpush1.msra.mxu0 %v273
    %656 = vmatprep.subr.mxu0 0.0
    %657 = vmatpush1.msra.mxu0 %v274
    %658 = vmatprep.subr.mxu0 0.0
    %659 = vmatpush1.msra.mxu0 %v275
    %660 = vmatprep.subr.mxu0 0.0
    %661 = vmatpush1.msra.mxu0 %v276
    %662 = vmatprep.subr.mxu0 0.0
    %663 = vmatpush1.msra.mxu0 %v277
    %664 = vmatprep.subr.mxu0 0.0
    %665 = vmatpush1.msra.mxu0 %v278
    %666 = vmatprep.subr.mxu0 0.0
    %667 = vmatpush1.msra.mxu0 %v279
    %668 = vmatprep.subr.mxu0 0.0
    %669 = vmatpush1.msra.mxu0 %v280
    %670 = vmatprep.subr.mxu0 0.0
    %671 = vmatpush1.msra.mxu0 %v281
    %672 = vmatprep.subr.mxu0 0.0
    %673 = vmatpush1.msra.mxu0 %v282
    %674 = vmatprep.subr.mxu0 0.0
    %675 = vmatpush1.msra.mxu0 %v283
    %676 = vmatprep.subr.mxu0 0.0
    %677 = vmatpush1.msra.mxu0 %v284
    %678 = vmatprep.subr.mxu0 0.0
    %679 = vmatpush1.msra.mxu0 %v285
    %680 = vmatprep.subr.mxu0 0.0
    %681 = vmatpush1.msra.mxu0 %v286
    %682 = vmatprep.subr.mxu0 0.0
    %683 = vmatpush1.msra.mxu0 %v287
    %684 = vmatprep.subr.mxu0 0.0
    %685 = vmatpush1.msra.mxu0 %v288
    %686 = vmatprep.subr.mxu0 0.0
    %687 = vmatpush1.msra.mxu0 %v289
    %688 = vmatprep.subr.mxu0 0.0
    %689 = vmatpush1.msra.mxu0 %v290
    %690 = vmatprep.subr.mxu0 0.0
    %691 = vmatpush1.msra.mxu0 %v291
    %692 = vmatprep.subr.mxu0 0.0
    %693 = vmatpush1.msra.mxu0 %v292
    %694 = vmatprep.subr.mxu0 0.0
    %695 = vmatpush1.msra.mxu0 %v293
    %696 = vmatprep.subr.mxu0 0.0
    %697 = vmatpush1.msra.mxu0 %v294
    %698 = vmatprep.subr.mxu0 0.0
    %699 = vmatpush1.msra.mxu0 %v295
    %700 = vmatprep.subr.mxu0 0.0
    %701 = vmatpush1.msra.mxu0 %v296
    %702 = vmatprep.subr.mxu0 0.0
    %703 = vmatpush1.msra.mxu0 %v297
    %704 = vmatprep.subr.mxu0 0.0
    %705 = vmatpush1.msra.mxu0 %v298
    %706 = vmatprep.subr.mxu0 0.0
    %707 = vmatpush1.msra.mxu0 %v299
    %708 = vmatprep.subr.mxu0 0.0
    %709 = vmatpush1.msra.mxu0 %v300
    %710 = vmatprep.subr.mxu0 0.0
    %711 = vmatpush1.msra.mxu0 %v301
    %712 = vmatprep.subr.mxu0 0.0
    %713 = vmatpush1.msra.mxu0 %v302
    %714 = vmatprep.mubr.f32.mxu0 %v410
    %715 = vmatmul.mubr.f32.gmra.mrb[0].mxu0 %v408
    %v716 = vpop.f32.mrb[0].mxu0
    %v717 = vadd.f32 %v647, %v716
    %v718 = vpop.f32.mrb[0].mxu0
    %719 = vdwg.mxu0
    %720 = vmatprep.subr.mxu0 0.0
    %721 = vmatpush1.msra.mxu0 %v303
    %722 = vmatprep.subr.mxu0 0.0
    %723 = vmatpush1.msra.mxu0 %v304
    %724 = vmatprep.subr.mxu0 0.0
    %725 = vmatpush1.msra.mxu0 %v305
    %726 = vmatprep.subr.mxu0 0.0
    %727 = vmatpush1.msra.mxu0 %v306
    %728 = vmatprep.subr.mxu0 0.0
    %729 = vmatpush1.msra.mxu0 %v307
    %730 = vmatprep.subr.mxu0 0.0
    %731 = vmatpush1.msra.mxu0 %v308
    %732 = vmatprep.subr.mxu0 0.0
    %733 = vmatpush1.msra.mxu0 %v309
    %734 = vmatprep.subr.mxu0 0.0
    %735 = vmatpush1.msra.mxu0 %v310
    %736 = vmatprep.subr.mxu0 0.0
    %737 = vmatpush1.msra.mxu0 %v311
    %738 = vmatprep.subr.mxu0 0.0
    %739 = vmatpush1.msra.mxu0 %v312
    %740 = vmatprep.subr.mxu0 0.0
    %741 = vmatpush1.msra.mxu0 %v313
    %742 = vmatprep.subr.mxu0 0.0
    %743 = vmatpush1.msra.mxu0 %v314
    %744 = vmatprep.subr.mxu0 0.0
    %745 = vmatpush1.msra.mxu0 %v315
    %746 = vmatprep.subr.mxu0 0.0
    %747 = vmatpush1.msra.mxu0 %v316
    %748 = vmatprep.subr.mxu0 0.0
    %749 = vmatpush1.msra.mxu0 %v317
    %750 = vmatprep.subr.mxu0 0.0
    %751 = vmatpush1.msra.mxu0 %v318
    %752 = vmatprep.subr.mxu0 0.0
    %753 = vmatpush1.msra.mxu0 %v319
    %754 = vmatprep.subr.mxu0 0.0
    %755 = vmatpush1.msra.mxu0 %v320
    %756 = vmatprep.subr.mxu0 0.0
    %757 = vmatpush1.msra.mxu0 %v321
    %758 = vmatprep.subr.mxu0 0.0
    %759 = vmatpush1.msra.mxu0 %v322
    %760 = vmatprep.subr.mxu0 0.0
    %761 = vmatpush1.msra.mxu0 %v323
    %762 = vmatprep.subr.mxu0 0.0
    %763 = vmatpush1.msra.mxu0 %v324
    %764 = vmatprep.subr.mxu0 0.0
    %765 = vmatpush1.msra.mxu0 %v325
    %766 = vmatprep.subr.mxu0 0.0
    %767 = vmatpush1.msra.mxu0 %v326
    %768 = vmatprep.subr.mxu0 0.0
    %769 = vmatpush1.msra.mxu0 %v327
    %770 = vmatprep.subr.mxu0 0.0
    %771 = vmatpush1.msra.mxu0 %v328
    %772 = vmatprep.subr.mxu0 0.0
    %773 = vmatpush1.msra.mxu0 %v329
    %774 = vmatprep.subr.mxu0 0.0
    %775 = vmatpush1.msra.mxu0 %v330
    %776 = vmatprep.subr.mxu0 0.0
    %777 = vmatpush1.msra.mxu0 %v331
    %778 = vmatprep.subr.mxu0 0.0
    %779 = vmatpush1.msra.mxu0 %v332
    %780 = vmatprep.subr.mxu0 0.0
    %781 = vmatpush1.msra.mxu0 %v333
    %782 = vmatprep.subr.mxu0 0.0
    %783 = vmatpush1.msra.mxu0 %v334
    %784 = vmatprep.mubr.f32.mxu0 %v426
    %785 = vmatmul.mubr.f32.gmra.mrb[0].mxu0 %v418
    %v786 = vpop.f32.mrb[0].mxu0
    %v787 = vadd.f32 %v717, %v786
    %v788 = vpop.f32.mrb[0].mxu0
    %789 = vdwg.mxu0
    %790 = vmatprep.subr.mxu0 0.0
    %791 = vmatpush1.msra.mxu0 %v335
    %792 = vmatprep.subr.mxu0 0.0
    %793 = vmatpush1.msra.mxu0 %v336
    %794 = vmatprep.subr.mxu0 0.0
    %795 = vmatpush1.msra.mxu0 %v337
    %796 = vmatprep.subr.mxu0 0.0
    %797 = vmatpush1.msra.mxu0 %v338
    %798 = vmatprep.subr.mxu0 0.0
    %799 = vmatpush1.msra.mxu0 %v339
    %800 = vmatprep.subr.mxu0 0.0
    %801 = vmatpush1.msra.mxu0 %v340
    %802 = vmatprep.subr.mxu0 0.0
    %803 = vmatpush1.msra.mxu0 %v341
    %804 = vmatprep.subr.mxu0 0.0
    %805 = vmatpush1.msra.mxu0 %v342
    %806 = vmatprep.subr.mxu0 0.0
    %807 = vmatpush1.msra.mxu0 %v343
    %808 = vmatprep.subr.mxu0 0.0
    %809 = vmatpush1.msra.mxu0 %v344
    %810 = vmatprep.subr.mxu0 0.0
    %811 = vmatpush1.msra.mxu0 %v345
    %812 = vmatprep.subr.mxu0 0.0
    %813 = vmatpush1.msra.mxu0 %v346
    %814 = vmatprep.subr.mxu0 0.0
    %815 = vmatpush1.msra.mxu0 %v347
    %816 = vmatprep.subr.mxu0 0.0
    %817 = vmatpush1.msra.mxu0 %v348
    %818 = vmatprep.subr.mxu0 0.0
    %819 = vmatpush1.msra.mxu0 %v349
    %820 = vmatprep.subr.mxu0 0.0
    %821 = vmatpush1.msra.mxu0 %v350
    %822 = vmatprep.subr.mxu0 0.0
    %823 = vmatpush1.msra.mxu0 %v351
    %824 = vmatprep.subr.mxu0 0.0
    %825 = vmatpush1.msra.mxu0 %v352
    %826 = vmatprep.subr.mxu0 0.0
    %827 = vmatpush1.msra.mxu0 %v353
    %828 = vmatprep.subr.mxu0 0.0
    %829 = vmatpush1.msra.mxu0 %v354
    %830 = vmatprep.subr.mxu0 0.0
    %831 = vmatpush1.msra.mxu0 %v355
    %832 = vmatprep.subr.mxu0 0.0
    %833 = vmatpush1.msra.mxu0 %v356
    %834 = vmatprep.subr.mxu0 0.0
    %835 = vmatpush1.msra.mxu0 %v357
    %836 = vmatprep.subr.mxu0 0.0
    %837 = vmatpush1.msra.mxu0 %v358
    %838 = vmatprep.subr.mxu0 0.0
    %839 = vmatpush1.msra.mxu0 %v359
    %840 = vmatprep.subr.mxu0 0.0
    %841 = vmatpush1.msra.mxu0 %v360
    %842 = vmatprep.subr.mxu0 0.0
    %843 = vmatpush1.msra.mxu0 %v361
    %844 = vmatprep.subr.mxu0 0.0
    %845 = vmatpush1.msra.mxu0 %v362
    %846 = vmatprep.subr.mxu0 0.0
    %847 = vmatpush1.msra.mxu0 %v363
    %848 = vmatprep.subr.mxu0 0.0
    %849 = vmatpush1.msra.mxu0 %v364
    %850 = vmatprep.subr.mxu0 0.0
    %851 = vmatpush1.msra.mxu0 %v365
    %852 = vmatprep.subr.mxu0 0.0
    %853 = vmatpush1.msra.mxu0 %v366
    %854 = vmatprep.mubr.f32.mxu0 %v427
    %855 = vmatmul.mubr.f32.gmra.mrb[0].mxu0 %v425
    %v856 = vpop.f32.mrb[0].mxu0
    %v857 = vadd.f32 %v787, %v856
    %v858 = vpop.f32.mrb[0].mxu0
    %859 = vdwg.mxu0
    %v860 = vld [vmem:[%s5] sm:$0xff]
    %v861 = vld [vmem:[%s5 + $0x8] sm:$0xff]
    %v862 = vld [vmem:[%s6] sm:$0x1]
    %v864 = vlaneseq
    %v865 = vshrl.u32 %v864, 7
    %v866 = vsub.s32 0, %v865
    %v867 = vrot.slane %v862, %v866
    %vm869 = vcmask 130048
    %v871 = vsel %vm869, %v171, 0
    %873 = vmatprep.subr.mxu0 0.0
    %874 = vmatpush1.msra.mxu0 %v860
    %875 = vmatprep.subr.mxu0 0.0
    %876 = vmatpush1.msra.mxu0 %v861
    %877 = vmatprep.subr.mxu0 0.0
    %878 = vmatpush1.msra.mxu0 0.0
    %879 = vmatprep.subr.mxu0 0.0
    %880 = vmatpush1.msra.mxu0 0.0
    %881 = vmatprep.subr.mxu0 0.0
    %882 = vmatpush1.msra.mxu0 0.0
    %883 = vmatprep.subr.mxu0 0.0
    %884 = vmatpush1.msra.mxu0 0.0
    %885 = vmatprep.subr.mxu0 0.0
    %886 = vmatpush1.msra.mxu0 0.0
    %887 = vmatprep.subr.mxu0 0.0
    %888 = vmatpush1.msra.mxu0 0.0
    %889 = vmatprep.subr.mxu0 0.0
    %890 = vmatpush1.msra.mxu0 0.0
    %891 = vmatprep.subr.mxu0 0.0
    %892 = vmatpush1.msra.mxu0 0.0
    %893 = vmatprep.subr.mxu0 0.0
    %894 = vmatpush1.msra.mxu0 0.0
    %895 = vmatprep.subr.mxu0 0.0
    %896 = vmatpush1.msra.mxu0 0.0
    %897 = vmatprep.subr.mxu0 0.0
    %898 = vmatpush1.msra.mxu0 0.0
    %899 = vmatprep.subr.mxu0 0.0
    %900 = vmatpush1.msra.mxu0 0.0
    %901 = vmatprep.subr.mxu0 0.0
    %902 = vmatpush1.msra.mxu0 0.0
    %903 = vmatprep.subr.mxu0 0.0
    %904 = vmatpush1.msra.mxu0 0.0
    %905 = vmatprep.subr.mxu0 0.0
    %906 = vmatpush1.msra.mxu0 0.0
    %907 = vmatprep.subr.mxu0 0.0
    %908 = vmatpush1.msra.mxu0 0.0
    %909 = vmatprep.subr.mxu0 0.0
    %910 = vmatpush1.msra.mxu0 0.0
    %911 = vmatprep.subr.mxu0 0.0
    %912 = vmatpush1.msra.mxu0 0.0
    %913 = vmatprep.subr.mxu0 0.0
    %914 = vmatpush1.msra.mxu0 0.0
    %915 = vmatprep.subr.mxu0 0.0
    %916 = vmatpush1.msra.mxu0 0.0
    %917 = vmatprep.subr.mxu0 0.0
    %918 = vmatpush1.msra.mxu0 0.0
    %919 = vmatprep.subr.mxu0 0.0
    %920 = vmatpush1.msra.mxu0 0.0
    %921 = vmatprep.subr.mxu0 0.0
    %922 = vmatpush1.msra.mxu0 0.0
    %923 = vmatprep.subr.mxu0 0.0
    %924 = vmatpush1.msra.mxu0 0.0
    %925 = vmatprep.subr.mxu0 0.0
    %926 = vmatpush1.msra.mxu0 0.0
    %927 = vmatprep.subr.mxu0 0.0
    %928 = vmatpush1.msra.mxu0 0.0
    %929 = vmatprep.subr.mxu0 0.0
    %930 = vmatpush1.msra.mxu0 0.0
    %931 = vmatprep.subr.mxu0 0.0
    %932 = vmatpush1.msra.mxu0 0.0
    %933 = vmatprep.subr.mxu0 0.0
    %934 = vmatpush1.msra.mxu0 0.0
    %935 = vmatprep.subr.mxu0 0.0
    %936 = vmatpush1.msra.mxu0 0.0
    %937 = vmatprep.mubr.f32.mxu0 0.0
    %938 = vmatmul.mubr.f32.gmra.mrb[0].mxu0 %v871
    %v939 = vpop.f32.mrb[0].mxu0
    %v940 = vadd.f32 %v867, %v939
    %v941 = vpop.f32.mrb[0].mxu0
    %942 = vdwg.mxu0
    %v943 = vmul.f32 %v857, %v857
    %vm944 = vcmask 254976
    %v945 = vsel %vm944, %v943, 0.0
    %946 = vadd.xlane.f32.xlu0 %v945
    %v947 = vpop.xlane.xlu0 %946
    %v948 = vadd.f32 %v947, 1e-12
    %v949 = vrsqrt.pop %v948
    %v950 = vmul.f32 %v857, %v949
    %v951 = vmul.f32 %v940, %v940
    %v952 = vsel %vm944, %v951, 0.0
    %953 = vadd.xlane.f32.xlu0 %v952
    %v954 = vpop.xlane.xlu0 %953
    %v955 = vadd.f32 %v954, 1e-12
    %v956 = vrsqrt.pop %v955
    %v957 = vmul.f32 %v940, %v956
    %vm958 = vcmask 261120
    %v960 = vsel %vm958, %v950, 0
    %v963 = vsel %vm958, %v957, 0
    %965 = vmatprep.subr.mxu0 0.0
    %966 = vmatpush1.xpose.msra.mxu0 %v963
    %967 = vmatprep.subr.mxu0 0.0
    %968 = vmatpush1.xpose.msra.mxu0 0.0
    %969 = vmatprep.subr.mxu0 0.0
    %970 = vmatpush1.xpose.msra.mxu0 0.0
    %971 = vmatprep.subr.mxu0 0.0
    %972 = vmatpush1.xpose.msra.mxu0 0.0
    %973 = vmatprep.subr.mxu0 0.0
    %974 = vmatpush1.xpose.msra.mxu0 0.0
    %975 = vmatprep.subr.mxu0 0.0
    %976 = vmatpush1.xpose.msra.mxu0 0.0
    %977 = vmatprep.subr.mxu0 0.0
    %978 = vmatpush1.xpose.msra.mxu0 0.0
    %979 = vmatprep.subr.mxu0 0.0
    %980 = vmatpush1.xpose.msra.mxu0 0.0
    %981 = vmatprep.subr.mxu0 0.0
    %982 = vmatpush1.xpose.msra.mxu0 0.0
    %983 = vmatprep.subr.mxu0 0.0
    %984 = vmatpush1.xpose.msra.mxu0 0.0
    %985 = vmatprep.subr.mxu0 0.0
    %986 = vmatpush1.xpose.msra.mxu0 0.0
    %987 = vmatprep.subr.mxu0 0.0
    %988 = vmatpush1.xpose.msra.mxu0 0.0
    %989 = vmatprep.subr.mxu0 0.0
    %990 = vmatpush1.xpose.msra.mxu0 0.0
    %991 = vmatprep.subr.mxu0 0.0
    %992 = vmatpush1.xpose.msra.mxu0 0.0
    %993 = vmatprep.subr.mxu0 0.0
    %994 = vmatpush1.xpose.msra.mxu0 0.0
    %995 = vmatprep.subr.mxu0 0.0
    %996 = vmatpush1.xpose.msra.mxu0 0.0
    %997 = vmatprep.subr.mxu0 0.0
    %998 = vmatpush1.xpose.msra.mxu0 0.0
    %999 = vmatprep.subr.mxu0 0.0
    %1000 = vmatpush1.xpose.msra.mxu0 0.0
    %1001 = vmatprep.subr.mxu0 0.0
    %1002 = vmatpush1.xpose.msra.mxu0 0.0
    %1003 = vmatprep.subr.mxu0 0.0
    %1004 = vmatpush1.xpose.msra.mxu0 0.0
    %1005 = vmatprep.subr.mxu0 0.0
    %1006 = vmatpush1.xpose.msra.mxu0 0.0
    %1007 = vmatprep.subr.mxu0 0.0
    %1008 = vmatpush1.xpose.msra.mxu0 0.0
    %1009 = vmatprep.subr.mxu0 0.0
    %1010 = vmatpush1.xpose.msra.mxu0 0.0
    %1011 = vmatprep.subr.mxu0 0.0
    %1012 = vmatpush1.xpose.msra.mxu0 0.0
    %1013 = vmatprep.subr.mxu0 0.0
    %1014 = vmatpush1.xpose.msra.mxu0 0.0
    %1015 = vmatprep.subr.mxu0 0.0
    %1016 = vmatpush1.xpose.msra.mxu0 0.0
    %1017 = vmatprep.subr.mxu0 0.0
    %1018 = vmatpush1.xpose.msra.mxu0 0.0
    %1019 = vmatprep.subr.mxu0 0.0
    %1020 = vmatpush1.xpose.msra.mxu0 0.0
    %1021 = vmatprep.subr.mxu0 0.0
    %1022 = vmatpush1.xpose.msra.mxu0 0.0
    %1023 = vmatprep.subr.mxu0 0.0
    %1024 = vmatpush1.xpose.msra.mxu0 0.0
    %1025 = vmatprep.subr.mxu0 0.0
    %1026 = vmatpush1.xpose.msra.mxu0 0.0
    %1027 = vmatprep.subr.mxu0 0.0
    %1028 = vmatpush1.xpose.msra.mxu0 0.0
    %1029 = vmatprep.mubr.f32.mxu0 0.0
    %1030 = vmatmul.mubr.f32.gmra.mrb[0].mxu0 %v960
    %v1031 = vpop.f32.mrb[0].mxu0
    %v1032 = vadd.f32 0.0, %v1031
    %v1033 = vpop.f32.mrb[0].mxu0
    %1034 = vdwg.mxu0
    %v1035 = vmul.f32 %v1032, 14.285714
    %v1036 = vrcp.pop 100.0
    %v1037 = vmul.f32 %v1035, %v1036
    %v1038 = vsub.f32 1.0, %v1037
    %vm1039 = vcmask 9216
    %1040 = vst.msk [vmem:[#allocation2] sm:$0x3] %vm1039, %v1038
    // Predicated region
    $region30: #{tpu_custom_call.1} parent=1 // pred_check
      _
    $region31: #{tpu_custom_call.1} parent=1 // pred_check_branch
      %1042 = sbr.rel (0) target = $region33
    $region32: #{tpu_custom_call.1} parent=1 // pred_region
      %s1044 = ssub.s32 32, 32
      %1045 = vsyncadd [#allocation3], %s1044
      %s1047 = sshll.u32 [#allocation2], 4
      %s1048 = int_to_ptr.vmem [resolvable:$true] %s1047
      %1050 = dma.vmem_to_hbm [thread:$0]  %s1048, 32, %s7, [#allocation3]
    $region33: #{tpu_custom_call.1} parent=1 // pred_fallthru
      _
    // Predicated region
    $region34: #{tpu_custom_call.1} parent=1 // pred_check
      _
    $region35: #{tpu_custom_call.1} parent=1 // pred_check_branch
      %1052 = sbr.rel (0) target = $region37
    $region36: #{tpu_custom_call.1} parent=1 // pred_region
      %1053 = dma.done [#allocation3], 32
    $region37: #{tpu_custom_call.1} parent=1 // pred_fallthru
      _
    %1054 = vsyncpa [#allocation3], 1

</llo_original>
